<compile_context>
chip_gen: v6e
topology: v6e:2x2x1
jax: 0.10.0
libtpu: 0.0.40
codegen_flags: <defaults>
</compile_context>

<pallas_src>
import jax
import jax.numpy as jnp
from jax.experimental import pallas as pl
from jax.experimental.pallas import tpu as pltpu


def _round_up(x, m):
    return ((x + m - 1) // m) * m


def _patch_embed_kernel(x_ref, w_ref, b_ref, o_ref):
    # x_ref: (TM, K) bf16   w_ref: (K, TE) bf16   b_ref: (1, TE) f32   o_ref: (TM, TE)
    acc = jnp.dot(x_ref[...], w_ref[...], preferred_element_type=jnp.float32)
    o_ref[...] = (acc + b_ref[...]).astype(o_ref.dtype)


def _vmem_budget():
    """Generation-aware VMEM tile-sizing budget and compiler vmem limit."""
    cap = 64 << 20  # conservative fallback = v7x per-TensorCore VMEM
    try:
        info = pltpu.get_tpu_info()
        cap = int(getattr(info, "vmem_capacity_bytes", cap)) or cap
    except Exception:
        pass
    limit = min(int(cap * 0.75), cap - (8 << 20))   # 48 MiB on v7x, 96 MiB on v5e/v6e
    budget = int(limit * 0.85)                      # headroom for Mosaic scratch
    return budget, limit


def _choose_tiles(M, K, Ep, in_bytes, out_bytes, budget_bytes):
    """Pick (TM, TE).  TE keeps the double-buffered weight tile within ~1/3 of
    the budget (E-tiling only kicks in for very large K*E); TM is the largest
    128-multiple fitting the remaining budget with double-buffered in/out tiles."""
    te_cap = max(128, ((budget_bytes // 3) // max(2 * K * in_bytes, 1)) // 128 * 128)
    te = min(Ep, te_cap)

    fixed = 2 * K * te * in_bytes + 2 * te * 4            # resident weight + bias tiles
    per_row = 2 * K * in_bytes + 2 * te * out_bytes       # streamed input + output tiles
    tm = (budget_bytes - fixed) // max(per_row, 1)
    tm = max(128, (min(tm, 2048) // 128) * 128)
    tm = min(tm, _round_up(M, 8))                         # don't over-tile tiny problems
    return tm, te


def patch_embedding(x, weight, bias, patch_size, *,
                    compute_dtype=jnp.bfloat16, out_dtype=None):
    """x: (B, C, H, W).  weight: (E, C, p, p).  bias: (E,).
    Returns (B, num_patches, E) — same semantics as the PyTorch module."""
    B, C, H, W = x.shape
    E = weight.shape[0]
    p = patch_size
    assert H % p == 0 and W % p == 0
    Hp, Wp = H // p, W // p
    num_patches = Hp * Wp
    out_dtype = x.dtype if out_dtype is None else out_dtype

    M = B * num_patches
    K = C * p * p

    # ---- glue: patchify as ONE bf16 XLA transpose (cast first -> 2 B/elem) ----
    # Patch vector ordered (C, kh, kw) to match the OIHW conv-weight reshape.
    # TODO(synk): fuse this transpose into the kernel (see header note).
    xp = (x.astype(compute_dtype)
           .reshape(B, C, Hp, p, Wp, p)
           .transpose(0, 2, 4, 1, 3, 5)
           .reshape(M, K))

    # Weight / bias are tiny: pad E only when it is not 128-aligned so output
    # stores stay lane-dense (unmasked vst).  K needs no padding at all.
    Ep = E if E % 128 == 0 else _round_up(E, 128)
    w_mat = weight.reshape(E, K).T.astype(compute_dtype)   # (K, E)
    b_vec = bias.astype(jnp.float32)
    if Ep != E:
        w_mat = jnp.pad(w_mat, ((0, 0), (0, Ep - E)))
        b_vec = jnp.pad(b_vec, (0, Ep - E))
    b_mat = b_vec.reshape(1, Ep)

    in_bytes = jnp.dtype(compute_dtype).itemsize
    out_bytes = jnp.dtype(out_dtype).itemsize
    budget, vmem_limit = _vmem_budget()
    TM, TE = _choose_tiles(M, K, Ep, in_bytes, out_bytes, budget)

    grid = (pl.cdiv(M, TM), pl.cdiv(Ep, TE))

    cost = pl.CostEstimate(
        flops=2 * M * K * E,
        transcendentals=0,
        bytes_accessed=(M * K * in_bytes + K * E * in_bytes + E * 4
                        + M * E * out_bytes),
    )

    out = pl.pallas_call(
        _patch_embed_kernel,
        out_shape=jax.ShapeDtypeStruct((M, Ep), out_dtype),
        grid=grid,
        in_specs=[
            pl.BlockSpec((TM, K), lambda i, j: (i, 0)),   # patch tile, streamed over M
            pl.BlockSpec((K, TE), lambda i, j: (0, j)),   # weight tile, resident over M
            pl.BlockSpec((1, TE), lambda i, j: (0, j)),   # bias tile, resident over M
        ],
        out_specs=pl.BlockSpec((TM, TE), lambda i, j: (i, j)),
        compiler_params=pltpu.CompilerParams(
            dimension_semantics=("parallel", "parallel"),  # independent tiles -> megacore
            vmem_limit_bytes=vmem_limit,
        ),
        cost_estimate=cost,
    )(xp, w_mat, b_mat)

    if Ep != E:
        out = out[:, :E]
    return out.reshape(B, num_patches, E)


if __name__ == "__main__":
    # Small shapes consistent with the module: patch_size=4, in_chans=4,
    # embed_dim=32, spatial=16 -> num_patches = 16.
    B, C, H, W = 2, 4, 16, 16
    patch_size = 4
    embed_dim = 32

    key = jax.random.PRNGKey(0)
    kx, kw, kb = jax.random.split(key, 3)

    x = jax.random.normal(kx, (B, C, H, W), dtype=jnp.float32)
    weight = jax.random.normal(
        kw, (embed_dim, C, patch_size, patch_size), dtype=jnp.float32) * 0.02
    bias = jax.random.normal(kb, (embed_dim,), dtype=jnp.float32) * 0.02

    fn = jax.jit(lambda x_, w_, b_: patch_embedding(x_, w_, b_, patch_size))
    out = jax.block_until_ready(fn(x, weight, bias))

    num_patches = (H // patch_size) * (W // patch_size)
    assert out.shape == (B, num_patches, embed_dim)

    # Tight check against a reference mirroring the kernel math
    # (bf16-rounded inputs, f32 accumulation, f32 bias add).
    xp = x.reshape(B, C, H // patch_size, patch_size, W // patch_size, patch_size)
    xp = jnp.transpose(xp, (0, 2, 4, 1, 3, 5)).reshape(B * num_patches, -1)
    w_mat = weight.reshape(embed_dim, -1).T
    ref_bf16 = (jnp.dot(xp.astype(jnp.bfloat16).astype(jnp.float32),
                        w_mat.astype(jnp.bfloat16).astype(jnp.float32),
                        precision=jax.lax.Precision.HIGHEST)
                + bias).reshape(B, num_patches, embed_dim)
    assert jnp.allclose(out, ref_bf16, atol=1e-4, rtol=1e-4)

    # Loose sanity check against the exact f32 conv (nn.Conv2d semantics).
    ref_f32 = jax.lax.conv_general_dilated(
        x, weight, window_strides=(patch_size, patch_size), padding="VALID",
        dimension_numbers=("NCHW", "OIHW", "NCHW"))
    ref_f32 = ref_f32 + bias.reshape(1, embed_dim, 1, 1)
    ref_f32 = ref_f32.reshape(B, embed_dim, -1).transpose(0, 2, 1)
    assert jnp.allclose(out, ref_f32, atol=3e-2, rtol=3e-2)

    print("KERNEL_OK")
</pallas_src>

<mosaic_0001>
module attributes {stable_mosaic.version = 11 : i64} {
  func.func @_patch_embed_kernel(%arg0: i32, %arg1: i32, %arg2: memref<32x64xbf16, #tpu.memory_space<vmem>>, %arg3: memref<64x128xbf16, #tpu.memory_space<vmem>>, %arg4: memref<1x128xf32, #tpu.memory_space<vmem>>, %arg5: memref<32x128xf32, #tpu.memory_space<vmem>>) attributes {dimension_semantics = [#tpu.dimension_semantics<parallel>, #tpu.dimension_semantics<parallel>], iteration_bounds = array<i64: 1, 1>, scalar_prefetch = 0 : i64, scratch_operands = 0 : i64, tpu.core_type = #tpu.core_type<tc>, window_params = [{transform_indices = @transform_0, window_bounds = array<i64: 32, 64>}, {transform_indices = @transform_1, window_bounds = array<i64: 64, 128>}, {transform_indices = @transform_2, window_bounds = array<i64: 1, 128>}, {transform_indices = @transform_3, window_bounds = array<i64: 32, 128>}]} {
    %c0 = arith.constant 0 : index
    %c0_0 = arith.constant 0 : index
    %0 = vector.load %arg2[%c0, %c0_0] : memref<32x64xbf16, #tpu.memory_space<vmem>>, vector<32x64xbf16>
    %c0_1 = arith.constant 0 : index
    %c0_2 = arith.constant 0 : index
    %1 = vector.load %arg3[%c0_1, %c0_2] : memref<64x128xbf16, #tpu.memory_space<vmem>>, vector<64x128xbf16>
    %cst = arith.constant dense<0.000000e+00> : vector<32x128xf32>
    %2 = tpu.matmul %0, %1, %cst {dimension_numbers = #tpu.dot_dimension_numbers<[1], [0], [0], [1], [0, 0, 1, 1], [], []>} : vector<32x64xbf16>, vector<64x128xbf16>, vector<32x128xf32> -> vector<32x128xf32>
    %c0_3 = arith.constant 0 : index
    %c0_4 = arith.constant 0 : index
    %3 = vector.load %arg4[%c0_3, %c0_4] : memref<1x128xf32, #tpu.memory_space<vmem>>, vector<1x128xf32>
    %4 = vector.broadcast %3 : vector<1x128xf32> to vector<32x128xf32>
    %5 = arith.addf %2, %4 : vector<32x128xf32>
    %c0_5 = arith.constant 0 : index
    %c0_6 = arith.constant 0 : index
    %6 = vector.load %arg5[%c0_5, %c0_6] : memref<32x128xf32, #tpu.memory_space<vmem>>, vector<32x128xf32>
    tpu.vector_store %arg5[%c0_5, %c0_6], %5 {strides = array<i32>} : memref<32x128xf32, #tpu.memory_space<vmem>>, vector<32x128xf32>,
    return
  }
  func.func @transform_0(%arg0: i32, %arg1: i32) -> (i32, i32) {
    %c0_i32 = arith.constant 0 : i32
    %c0_i32_0 = arith.constant 0 : i32
    return %arg0, %c0_i32 : i32, i32
  }
  func.func @transform_1(%arg0: i32, %arg1: i32) -> (i32, i32) {
    %c0_i32 = arith.constant 0 : i32
    %c0_i32_0 = arith.constant 0 : i32
    return %c0_i32, %arg1 : i32, i32
  }
  func.func @transform_2(%arg0: i32, %arg1: i32) -> (i32, i32) {
    %c0_i32 = arith.constant 0 : i32
    %c0_i32_0 = arith.constant 0 : i32
    return %c0_i32, %arg1 : i32, i32
  }
  func.func @transform_3(%arg0: i32, %arg1: i32) -> (i32, i32) {
    %c0_i32 = arith.constant 0 : i32
    return %arg0, %arg1 : i32, i32
  }
}

</mosaic_0001>

<llo_original>
// kernel: _lambda_.1
$region0: #{_lambda_.1}
  #allocation0 [shape = 'u32[]', space=smem, size = 0x4, offset = 0x4, fixed_abs, tag = 'smem constant byte address 0x4 - core index']
  #allocation1 [shape = 'u32[144,128]{1,0:T(1,128)}', space=vmem, size = 0x12000, scoped, tag = 'internal scratch']
  %s0 = inlined_call_operand.vmem [shape: bf16[32,64], index: 0, kind: input, shape index: {}]
  %s1 = inlined_call_operand.vmem [shape: bf16[64,128], index: 1, kind: input, shape index: {}]
  %s2 = inlined_call_operand.vmem [shape: f32[1,128], index: 2, kind: input, shape index: {}]
  %s3 = inlined_call_operand.hbm [shape: f32[32,128], index: 3, kind: output, shape index: {}]
  %s4 = sld [smem:[#allocation0]]
  $region22: #{_lambda_.1} parent=0
    _
  %s6 = ssub.s32 1, %s4
  %s7 = scalar_select 0, %s6, %s4
  $region1: #{_lambda_.1} parent=0
    #allocation2 [shape = 'u8[16384]{0}', space=vmem, size = 0x4000, scoped, tag = 'output window, operand 0, single buffered']
    #allocation3 [shape = 's32[1]{0}', space=sflag, size = 0x4, scoped, tag = 'scoped memory for _lambda_.1']
    %8 = vsyncpa [#allocation3], 0
    // Predicated region
    $region2: #{_lambda_.1} parent=1 // pred_check
      _
    $region3: #{_lambda_.1} parent=1 // pred_check_branch
      %10 = sbr.rel (0) target = $region5
    $region4: #{_lambda_.1} parent=1 // pred_region
      _
    $region5: #{_lambda_.1} parent=1 // pred_fallthru
      _
    // Predicated region
    $region6: #{_lambda_.1} parent=1 // pred_check
      _
    $region7: #{_lambda_.1} parent=1 // pred_check_branch
      %12 = sbr.rel (0) target = $region9
    $region8: #{_lambda_.1} parent=1 // pred_region
      _
    $region9: #{_lambda_.1} parent=1 // pred_fallthru
      _
    // Predicated region
    $region10: #{_lambda_.1} parent=1 // pred_check
      _
    $region11: #{_lambda_.1} parent=1 // pred_check_branch
      %14 = sbr.rel (0) target = $region13
    $region12: #{_lambda_.1} parent=1 // pred_region
      _
    $region13: #{_lambda_.1} parent=1 // pred_fallthru
      _
    %v16 = vld [vmem:[%s0] sm:$0xf]
    %v17 = vld [vmem:[%s0 + $0x4] sm:$0xf]
    %v18 = vld [vmem:[%s0 + $0x8] sm:$0xf]
    %v19 = vld [vmem:[%s0 + $0xc] sm:$0xf]
    %v20 = vld [vmem:[%s1] sm:$0xf]
    %v21 = vld [vmem:[%s1 + $0x4] sm:$0xf]
    %v22 = vld [vmem:[%s1 + $0x8] sm:$0xf]
    %v23 = vld [vmem:[%s1 + $0xc] sm:$0xf]
    %v24 = vld [vmem:[%s1 + $0x10] sm:$0xf]
    %v25 = vld [vmem:[%s1 + $0x14] sm:$0xf]
    %v26 = vld [vmem:[%s1 + $0x18] sm:$0xf]
    %v27 = vld [vmem:[%s1 + $0x1c] sm:$0xf]
    %v28 = vld [vmem:[%s2] sm:$0x1]
    %v30 = vlaneseq
    %v31 = vshrl.u32 %v30, 7
    %v32 = vsub.s32 0, %v31
    %v33 = vrot.slane %v28, %v32
    %v39 = vunpack.c.l.b16 %v16
    %v40 = vunpack.c.l.b16 %v17
    %v41 = vunpack.c.l.b16 %v18
    %v42 = vunpack.c.l.b16 %v19
    %v43 = vpack.c.b16 %v40, %v39
    %v44 = vpack.c.b16 %v42, %v41
    %v53 = vunpack.c.l.b16 %v20
    %v54 = vunpack.c.l.b16 %v21
    %v55 = vunpack.c.l.b16 %v22
    %v56 = vunpack.c.l.b16 %v23
    %v57 = vunpack.c.l.b16 %v24
    %v58 = vunpack.c.l.b16 %v25
    %v59 = vunpack.c.l.b16 %v26
    %v60 = vunpack.c.l.b16 %v27
    %v61 = vpack.c.b16 %v54, %v53
    %v62 = vpack.c.b16 %v56, %v55
    %v63 = vpack.c.b16 %v58, %v57
    %v64 = vpack.c.b16 %v60, %v59
    %vm69 = vcmask 523264
    %v71 = vsel %vm69, %v43, 0
    %v74 = vsel %vm69, %v44, 0
    %76 = vmatprep.subr.bf16.mxu0 0
    %77 = vmatpush1.bf16.msra.mxu0 0
    %78 = vmatprep.subr.bf16.mxu0 0
    %79 = vmatpush1.bf16.msra.mxu0 0
    %80 = vmatprep.subr.bf16.mxu0 0
    %81 = vmatpush1.bf16.msra.mxu0 0
    %82 = vmatprep.subr.bf16.mxu0 0
    %83 = vmatpush1.bf16.msra.mxu0 0
    %84 = vmatprep.subr.bf16.mxu0 0
    %85 = vmatpush1.bf16.msra.mxu0 %v64
    %86 = vmatprep.subr.bf16.mxu0 0
    %87 = vmatpush1.bf16.msra.mxu0 %v63
    %88 = vmatprep.subr.bf16.mxu0 0
    %89 = vmatpush1.bf16.msra.mxu0 %v62
    %90 = vmatprep.subr.bf16.mxu0 0
    %91 = vmatpush1.bf16.msra.mxu0 %v61
    %92 = vmatprep.subr.bf16.mxu0 0
    %93 = vmatpush2.bf16.msra.mxu0 0
    %94 = vmatprep.subr.bf16.mxu0 0
    %95 = vmatpush2.bf16.msra.mxu0 0
    %96 = vmatprep.subr.bf16.mxu0 0
    %97 = vmatpush2.bf16.msra.mxu0 0
    %98 = vmatprep.subr.bf16.mxu0 0
    %99 = vmatpush2.bf16.msra.mxu0 0
    %100 = vmatprep.subr.bf16.mxu0 0
    %101 = vmatpush2.bf16.msra.mxu0 0
    %102 = vmatprep.subr.bf16.mxu0 0
    %103 = vmatpush2.bf16.msra.mxu0 0
    %104 = vmatprep.subr.bf16.mxu0 0
    %105 = vmatpush2.bf16.msra.mxu0 0
    %106 = vmatprep.subr.bf16.mxu0 0
    %107 = vmatpush2.bf16.msra.mxu0 0
    %108 = vmatprep.mubr.bf16.mxu0 0
    %109 = vmatmul.mubr.bf16.gmra.mxu0 %v71
    %v110 = vpop.f32.mrf.mxu0
    %v111 = vadd.f32 %v33, %v110
    %v112 = vpop.f32.mrf.mxu0
    %v113 = vpop.f32.mrf.mxu0
    %v114 = vadd.f32 %v33, %v113
    %v115 = vpop.f32.mrf.mxu0
    %116 = vmatprep.mubr.bf16.mxu0 0
    %117 = vmatmul.mubr.bf16.gmra.mxu0 %v74
    %v118 = vpop.f32.mrf.mxu0
    %v119 = vadd.f32 %v33, %v118
    %v120 = vpop.f32.mrf.mxu0
    %v121 = vpop.f32.mrf.mxu0
    %v122 = vadd.f32 %v33, %v121
    %v123 = vpop.f32.mrf.mxu0
    %124 = vdwg.mxu0
    %125 = vst [vmem:[#allocation2] sm:$0xff] %v111
    %126 = vst [vmem:[#allocation2 + $0x8] sm:$0xff] %v114
    %127 = vst [vmem:[#allocation2 + $0x10] sm:$0xff] %v119
    %128 = vst [vmem:[#allocation2 + $0x18] sm:$0xff] %v122
    // Predicated region
    $region14: #{_lambda_.1} parent=1 // pred_check
      _
    $region15: #{_lambda_.1} parent=1 // pred_check_branch
      %130 = sbr.rel (0) target = $region17
    $region16: #{_lambda_.1} parent=1 // pred_region
      %s132 = ssub.s32 512, 512
      %133 = vsyncadd [#allocation3], %s132
      %s134 = sshll.u32 [#allocation2], 4
      %s135 = int_to_ptr.vmem [resolvable:$true] %s134
      %140 = dma.vmem_to_hbm [thread:$0]  %s135, 512, %s3, [#allocation3], 128, 128, 8
    $region17: #{_lambda_.1} parent=1 // pred_fallthru
      _
    // Predicated region
    $region18: #{_lambda_.1} parent=1 // pred_check
      _
    $region19: #{_lambda_.1} parent=1 // pred_check_branch
      %142 = sbr.rel (0) target = $region21
    $region20: #{_lambda_.1} parent=1 // pred_region
      %143 = dma.done [#allocation3], 512
    $region21: #{_lambda_.1} parent=1 // pred_fallthru
      _
    %144 = vsyncpa [#allocation3], 1

</llo_original>
